<compile_context>
chip_gen: v5e
topology: v5e:2x2
jax: 0.10.0
libtpu: 0.0.40
codegen_flags: <defaults>
</compile_context>

<pallas_src>
import math
import functools

import jax
import jax.numpy as jnp
import numpy as np
from jax.experimental import pallas as pl
from jax.experimental.pallas import tpu as pltpu


# ------------------------------ helpers ------------------------------

def _round_up(x, m):
    return (x + m - 1) // m * m


def _tile_lanes(n, max_tile):
    """Tile an axis used both as a sublane dim (mult of 8) and as a lane dim
    (mult of 128) of different blocks: either one full block, or 128-aligned
    tiles.  Returns (tile, padded_n)."""
    if n <= max_tile:
        return n, n
    tile = max(128, _round_up(max_tile, 128))
    return tile, _round_up(n, tile)


# ----------------------- value projection (+ mask) -----------------------

def _value_proj_kernel(x_ref, w_ref, b_ref, o_ref):
    # x: (1, tile_v, C) -> projected, channels-first bf16 (C, tile_v)
    y = jnp.dot(x_ref[0], w_ref[...], preferred_element_type=jnp.float32)
    y = y + b_ref[...]
    o_ref[0] = y.T.astype(o_ref.dtype)


def _value_proj_mask_kernel(x_ref, m_ref, w_ref, b_ref, o_ref):
    y = jnp.dot(x_ref[0], w_ref[...], preferred_element_type=jnp.float32)
    y = y + b_ref[...]
    yt = y.T * m_ref[...].astype(jnp.float32)      # (C, tile_v) * (1, tile_v)
    o_ref[0] = yt.astype(o_ref.dtype)


def value_proj_pallas(value, w, b, value_mask=None, *, max_rows=1024):
    """value: (bs, Len_v, C) -> channels-first projected value (bs, C, Lv_pad)
    in bf16.  The value_mask multiply (if any) is fused into the kernel."""
    bs, Len_v, C = value.shape
    tile, n_pad = _tile_lanes(Len_v, max_rows)
    if n_pad != Len_v:
        value = jnp.pad(value, ((0, 0), (0, n_pad - Len_v), (0, 0)))
        if value_mask is not None:
            value_mask = jnp.pad(value_mask, ((0, 0), (0, n_pad - Len_v)))

    grid = (bs, n_pad // tile)
    x_spec = pl.BlockSpec((1, tile, C), lambda i, j: (i, j, 0))
    w_spec = pl.BlockSpec((C, C), lambda i, j: (0, 0))       # resident
    b_spec = pl.BlockSpec((1, C), lambda i, j: (0, 0))       # resident
    o_spec = pl.BlockSpec((1, C, tile), lambda i, j: (i, 0, j))
    cp = pltpu.CompilerParams(dimension_semantics=("parallel", "parallel"))
    out_shape = jax.ShapeDtypeStruct((bs, C, n_pad), jnp.bfloat16)

    if value_mask is None:
        return pl.pallas_call(
            _value_proj_kernel, out_shape=out_shape, grid=grid,
            in_specs=[x_spec, w_spec, b_spec], out_specs=o_spec,
            compiler_params=cp,
        )(value, w, b.reshape(1, C))

    m_spec = pl.BlockSpec((1, tile), lambda i, j: (i, j))
    return pl.pallas_call(
        _value_proj_mask_kernel, out_shape=out_shape, grid=grid,
        in_specs=[x_spec, m_spec, w_spec, b_spec], out_specs=o_spec,
        compiler_params=cp,
    )(value, value_mask.astype(jnp.float32), w, b.reshape(1, C))


# ----------------------- fused deformable-attention core -----------------------

def _msda_core_kernel(q_ref, ref_ref, val_ref, sow_ref, sob_ref, aww_ref, awb_ref,
                      opw_ref, opb_ref, o_ref, *, spatial_shapes, num_heads,
                      num_points, head_dim, ref_dim, hw_chunk):
    """Fused MS-deformable-attention core for one (batch, q_tile) block.

    Queries live on the lane axis inside the kernel, so the per-level
    contraction is v(Dh, K) @ samp(K, Tq) with N = Tq (MXU lane-dense) and the
    projected value slab stays channels-first.

    q_ref:   (1, Tq, C)          queries (row layout; transposed once in-kernel)
    ref_ref: (1, L*ref_dim, Tq)  reference points, channels-first
    val_ref: (1, C, Len_v)       projected value, bf16, channels-first
    sow/sob, aww/awb:            sampling_offsets / attention_weights (W^T, b)
    opw/opb:                     output_proj (fused epilogue)
    o_ref:   (1, Tq, C)          lane-dense output block (single store)
    """
    H, P, Dh = num_heads, num_points, head_dim
    L = len(spatial_shapes)
    LP = L * P
    Tq = q_ref.shape[1]

    # One transpose per tile; everything downstream is (feature-rows, Tq-lanes).
    q_t = q_ref[0].astype(jnp.float32).T                                # (C, Tq)
    ref_t = ref_ref[0].astype(jnp.float32)                              # (L*rd, Tq)

    # Fused projections (f32 accumulate; offsets kept f32 for location accuracy).
    off_t = (jnp.dot(sow_ref[...], q_t, preferred_element_type=jnp.float32)
             + sob_ref[...])                                            # (2*H*LP, Tq)
    logit_t = (jnp.dot(aww_ref[...], q_t, preferred_element_type=jnp.float32)
               + awb_ref[...])                                          # (H*LP, Tq)

    # Per-head softmax over the L*P sampling points (narrow sublane reductions,
    # full lane width); divide moved onto the EUP via approx reciprocal.
    attn = []
    for h in range(H):
        lh = logit_t[h * LP:(h + 1) * LP, :]
        m = jnp.max(lh, axis=0, keepdims=True)
        e = jnp.exp(lh - m)
        s = jnp.sum(e, axis=0, keepdims=True)
        attn.append(e * pl.reciprocal(s, approx=True))                  # (LP, Tq)

    # Static level start offsets in the flattened value axis.
    starts = []
    s0 = 0
    for (Hs, Ws) in spatial_shapes:
        starts.append(s0)
        s0 += Hs * Ws

    out_heads = [jnp.zeros((Dh, Tq), jnp.float32) for _ in range(H)]

    for lvl, (Hs, Ws) in enumerate(spatial_shapes):
        start = starts[lvl]
        # Hoisted out of the head/point loops (iotas are not CSE'd by JAX).
        colx = jax.lax.broadcasted_iota(jnp.int32, (Ws, Tq), 0).astype(jnp.float32)
        if ref_dim == 2:
            ref_x = ref_t[2 * lvl:2 * lvl + 1, :]
            ref_y = ref_t[2 * lvl + 1:2 * lvl + 2, :]
        else:  # ref_dim == 4: (cx, cy, w, h) boxes
            ref_x = ref_t[4 * lvl + 0:4 * lvl + 1, :]
            ref_y = ref_t[4 * lvl + 1:4 * lvl + 2, :]
            ref_w = ref_t[4 * lvl + 2:4 * lvl + 3, :]
            ref_h = ref_t[4 * lvl + 3:4 * lvl + 4, :]

        # Chunk the flattened hw axis (whole image rows at a time) so the live
        # sampling matrix is bounded and contracted immediately.
        rows_per_chunk = max(1, min(Hs, hw_chunk // Ws))
        for r0 in range(0, Hs, rows_per_chunk):
            rc = min(rows_per_chunk, Hs - r0)
            kc = rc * Ws
            rowy = (jax.lax.broadcasted_iota(jnp.int32, (rc, Tq), 0) + r0
                    ).astype(jnp.float32)
            for h in range(H):
                samp = jnp.zeros((rc, Ws, Tq), jnp.float32)
                for p in range(P):
                    c = (h * L + lvl) * P + p
                    off_x = off_t[2 * c:2 * c + 1, :]                   # (1, Tq)
                    off_y = off_t[2 * c + 1:2 * c + 2, :]
                    if ref_dim == 2:
                        loc_x = ref_x + off_x * (1.0 / Ws)
                        loc_y = ref_y + off_y * (1.0 / Hs)
                    else:
                        loc_x = ref_x + off_x * (0.5 / P) * ref_w
                        loc_y = ref_y + off_y * (0.5 / P) * ref_h
                    # grid_sample(align_corners=False): pixel = loc*size - 0.5
                    x = loc_x * Ws - 0.5
                    y = loc_y * Hs - 0.5
                    # Separable bilinear "hat" weights; columns outside the map
                    # get 0 (== padding_mode='zeros'); softmax weight folded in.
                    wx = jnp.maximum(1.0 - jnp.abs(colx - x), 0.0)      # (Ws, Tq)
                    wy = jnp.maximum(1.0 - jnp.abs(rowy - y), 0.0)      # (rc, Tq)
                    wy = wy * attn[h][lvl * P + p:lvl * P + p + 1, :]
                    samp = samp + wy[:, None, :] * wx[None, :, :]       # (rc, Ws, Tq)
                samp2 = samp.reshape(kc, Tq).astype(jnp.bfloat16)
                v_chunk = val_ref[0, h * Dh:(h + 1) * Dh,
                                  start + r0 * Ws:start + r0 * Ws + kc]  # (Dh, kc)
                out_heads[h] = out_heads[h] + jnp.dot(
                    v_chunk, samp2, preferred_element_type=jnp.float32)  # (Dh, Tq)

    acc_t = jnp.concatenate(out_heads, axis=0)                          # (C, Tq)
    # Fused output projection + one lane-dense (Tq, C) store.
    out = (jnp.dot(acc_t.T, opw_ref[...], preferred_element_type=jnp.float32)
           + opb_ref[...])                                              # (Tq, C)
    o_ref[0] = out.astype(o_ref.dtype)


def deform_core_pallas(query, reference_points, value_cf, so_w, so_b, aw_w, aw_b,
                       op_w, op_b, spatial_shapes, num_heads, num_points, *,
                       max_q_tile=256, hw_chunk=1024):
    """query: (bs, Len_q, C); reference_points: (bs, Len_q, L, 2|4);
    value_cf: (bs, C, Lv_pad) bf16, channels-first (levels stacked row-major).
    Returns output_proj(MSDeformAttn(...)): (bs, Len_q, C) (output proj fused)."""
    bs, Len_q, C = query.shape
    Lv_pad = value_cf.shape[2]
    L = len(spatial_shapes)
    ref_dim = reference_points.shape[-1]
    Dh = C // num_heads
    TP = num_heads * L * num_points

    tile, lq_pad = _tile_lanes(Len_q, max_q_tile)
    if lq_pad != Len_q:
        pad = lq_pad - Len_q
        query = jnp.pad(query, ((0, 0), (0, pad), (0, 0)))
        reference_points = jnp.pad(reference_points,
                                   ((0, 0), (0, pad), (0, 0), (0, 0)))
    # Reference points channels-first (tiny tensor; avoids a narrow in-kernel
    # transpose with a 4-lane minor dim).
    ref_cf = reference_points.reshape(bs, lq_pad, L * ref_dim).transpose(0, 2, 1)

    kernel = functools.partial(
        _msda_core_kernel,
        spatial_shapes=tuple((int(a), int(b)) for a, b in spatial_shapes),
        num_heads=num_heads, num_points=num_points, head_dim=Dh, ref_dim=ref_dim,
        hw_chunk=hw_chunk)

    # VMEM budget derived from the actual blocks (double-buffered) + the largest
    # live in-kernel intermediates, capped v7x-safe at 40 MiB.
    est = (2 * (tile * C * 4 + L * ref_dim * tile * 4 + tile * C * 4)    # q/ref/out
           + 2 * (C * Lv_pad * 2)                                        # value slab
           + 2 * (3 * TP * C + 3 * TP + C * C + C) * 4                   # params
           + (C * tile + 5 * TP * tile + 3 * C * tile) * 4               # q_t/off/attn/acc
           + 3 * hw_chunk * tile * 4)                                    # samp chunk
    vmem_limit = int(min(40 * 2 ** 20, max(32 * 2 ** 20, 2 * est)))

    out = pl.pallas_call(
        kernel,
        out_shape=jax.ShapeDtypeStruct((bs, lq_pad, C), query.dtype),
        grid=(bs, lq_pad // tile),
        in_specs=[
            pl.BlockSpec((1, tile, C), lambda b, t: (b, t, 0)),            # query
            pl.BlockSpec((1, L * ref_dim, tile), lambda b, t: (b, 0, t)),  # ref (cf)
            # Resident value slab (changes only with b).
            # TODO(synk): pipeline_mode=pl.Buffered(1) here on v7x.
            pl.BlockSpec((1, C, Lv_pad), lambda b, t: (b, 0, 0)),
            pl.BlockSpec((TP * 2, C), lambda b, t: (0, 0)),                # so_w^T
            pl.BlockSpec((TP * 2, 1), lambda b, t: (0, 0)),                # so_b
            pl.BlockSpec((TP, C), lambda b, t: (0, 0)),                    # aw_w^T
            pl.BlockSpec((TP, 1), lambda b, t: (0, 0)),                    # aw_b
            pl.BlockSpec((C, C), lambda b, t: (0, 0)),                     # op_w
            pl.BlockSpec((1, C), lambda b, t: (0, 0)),                     # op_b
        ],
        out_specs=pl.BlockSpec((1, tile, C), lambda b, t: (b, t, 0)),
        compiler_params=pltpu.CompilerParams(
            dimension_semantics=("parallel", "parallel"),
            vmem_limit_bytes=vmem_limit),
    )(query, ref_cf, value_cf,
      so_w.T, so_b.reshape(TP * 2, 1), aw_w.T, aw_b.reshape(TP, 1),
      op_w, op_b.reshape(1, C))
    if lq_pad != Len_q:
        out = out[:, :Len_q]
    return out


# -------------------------- parameters (as __init__) --------------------------

def init_params(key, embed_dim, num_heads, num_levels, num_points):
    total_points = num_heads * num_levels * num_points
    k1, k2 = jax.random.split(key)

    # sampling_offsets: weight = 0, bias = grid_init (exact _reset_parameters)
    so_w = jnp.zeros((embed_dim, total_points * 2), jnp.float32)
    thetas = jnp.arange(num_heads, dtype=jnp.float32) * (2.0 * math.pi / num_heads)
    grid_init = jnp.stack([jnp.cos(thetas), jnp.sin(thetas)], -1)            # (H, 2)
    grid_init = grid_init / jnp.max(jnp.abs(grid_init), axis=-1, keepdims=True)
    grid_init = jnp.tile(grid_init.reshape(num_heads, 1, 1, 2),
                         (1, num_levels, num_points, 1))
    scaling = jnp.arange(1, num_points + 1, dtype=jnp.float32).reshape(1, 1, -1, 1)
    so_b = (grid_init * scaling).reshape(-1)

    # attention_weights: weight = 0, bias = 0
    aw_w = jnp.zeros((embed_dim, total_points), jnp.float32)
    aw_b = jnp.zeros((total_points,), jnp.float32)

    # value_proj / output_proj: xavier_uniform weight, bias = 0
    limit = math.sqrt(6.0 / (embed_dim + embed_dim))
    vp_w = jax.random.uniform(k1, (embed_dim, embed_dim), jnp.float32, -limit, limit)
    vp_b = jnp.zeros((embed_dim,), jnp.float32)
    op_w = jax.random.uniform(k2, (embed_dim, embed_dim), jnp.float32, -limit, limit)
    op_b = jnp.zeros((embed_dim,), jnp.float32)

    return dict(so_w=so_w, so_b=so_b, aw_w=aw_w, aw_b=aw_b,
                vp_w=vp_w, vp_b=vp_b, op_w=op_w, op_b=op_b)


# ------------------------------ forward (Pallas) ------------------------------

def msda_forward_pallas(params, query, reference_points, value, spatial_shapes,
                        num_heads, num_levels, num_points, value_mask=None):
    bs, Len_q, C = query.shape
    assert C % num_heads == 0
    assert C % 16 == 0, "embed_dim must be a multiple of 16 (bf16 sublane tile)"
    assert len(spatial_shapes) == num_levels
    assert value.shape[1] == sum(h * w for h, w in spatial_shapes)

    # Value projection (+ fused mask), emitted channels-first bf16 so the deform
    # contraction is lane-dense over queries and the resident slab is halved.
    v_cf = value_proj_pallas(value, params['vp_w'], params['vp_b'], value_mask)

    # Fused offsets/attention projections + softmax + multi-level bilinear
    # sampling + output projection, all inside one kernel.
    return deform_core_pallas(query, reference_points, v_cf,
                              params['so_w'], params['so_b'],
                              params['aw_w'], params['aw_b'],
                              params['op_w'], params['op_b'],
                              spatial_shapes, num_heads, num_points)


# --------------------------- pure-JAX reference ---------------------------

def ref_forward(params, query, reference_points, value, spatial_shapes,
                num_heads, num_levels, num_points, value_mask=None):
    hp = jax.lax.Precision.HIGHEST
    bs, Len_q, C = query.shape
    Len_v = value.shape[1]
    H, L, P = num_heads, num_levels, num_points
    Dh = C // H

    v = jnp.einsum('bnc,cd->bnd', value, params['vp_w'], precision=hp) + params['vp_b']
    if value_mask is not None:
        v = v * value_mask[..., None].astype(v.dtype)
    v = v.reshape(bs, Len_v, H, Dh)

    off = jnp.einsum('bqc,cd->bqd', query, params['so_w'], precision=hp) + params['so_b']
    off = off.reshape(bs, Len_q, H, L, P, 2)
    logits = jnp.einsum('bqc,cd->bqd', query, params['aw_w'], precision=hp) + params['aw_b']
    attn = jax.nn.softmax(logits.reshape(bs, Len_q, H, L * P), axis=-1)
    attn = attn.reshape(bs, Len_q, H, L, P)

    if reference_points.shape[-1] == 2:
        norm = jnp.array(spatial_shapes, jnp.float32)[:, ::-1].reshape(1, 1, 1, L, 1, 2)
        loc = reference_points.reshape(bs, Len_q, 1, L, 1, 2) + off / norm
    else:
        loc = (reference_points[:, :, None, :, None, :2]
               + off / P * reference_points[:, :, None, :, None, 2:] * 0.5)

    out = jnp.zeros((bs, H, Len_q, Dh), jnp.float32)
    start = 0
    for lvl, (Hs, Ws) in enumerate(spatial_shapes):
        hw = Hs * Ws
        v_l = v[:, start:start + hw].transpose(0, 2, 1, 3)            # (bs, H, hw, Dh)
        loc_l = loc[:, :, :, lvl].transpose(0, 2, 1, 3, 4)            # (bs, H, Len_q, P, 2)
        a_l = attn[:, :, :, lvl].transpose(0, 2, 1, 3)                # (bs, H, Len_q, P)
        x = loc_l[..., 0] * Ws - 0.5
        y = loc_l[..., 1] * Hs - 0.5
        x0 = jnp.floor(x).astype(jnp.int32)
        y0 = jnp.floor(y).astype(jnp.int32)
        lx = x - x0
        ly = y - y0
        for dy in (0, 1):
            for dx in (0, 1):
                xi = x0 + dx
                yi = y0 + dy
                w = (lx if dx else 1.0 - lx) * (ly if dy else 1.0 - ly)
                valid = (xi >= 0) & (xi < Ws) & (yi >= 0) & (yi < Hs)
                w = jnp.where(valid, w, 0.0) * a_l
                idx = jnp.clip(yi, 0, Hs - 1) * Ws + jnp.clip(xi, 0, Ws - 1)
                idxf = idx.reshape(bs, H, Len_q * P)
                g = jnp.take_along_axis(v_l, idxf[..., None], axis=2)
                g = g.reshape(bs, H, Len_q, P, Dh)
                out = out + jnp.sum(g * w[..., None], axis=3)
        start += hw

    out = out.transpose(0, 2, 1, 3).reshape(bs, Len_q, C)
    out = jnp.einsum('bqc,cd->bqd', out, params['op_w'], precision=hp) + params['op_b']
    return out


# ---------------------------------- main ----------------------------------

if __name__ == "__main__":
    embed_dim, num_heads, num_levels, num_points = 32, 4, 2, 2
    spatial_shapes = ((8, 8), (4, 4))
    bs, Len_q = 2, 16
    Len_v = sum(h * w for h, w in spatial_shapes)   # 80

    key = jax.random.PRNGKey(0)
    kp, kq, kr, kv, k1, k2 = jax.random.split(key, 6)
    params = init_params(kp, embed_dim, num_heads, num_levels, num_points)
    # Small non-zero offset / attention weights so the fused projections and the
    # softmax are actually exercised (the module's reset init zeroes them).
    params['so_w'] = 0.1 * jax.random.normal(k1, params['so_w'].shape, jnp.float32)
    params['aw_w'] = 0.5 * jax.random.normal(k2, params['aw_w'].shape, jnp.float32)

    query = jax.random.normal(kq, (bs, Len_q, embed_dim), jnp.float32)
    reference_points = jax.random.uniform(kr, (bs, Len_q, num_levels, 2), jnp.float32)
    value = jax.random.normal(kv, (bs, Len_v, embed_dim), jnp.float32)

    out = msda_forward_pallas(params, query, reference_points, value, spatial_shapes,
                              num_heads, num_levels, num_points)
    out = jax.block_until_ready(out)

    ref = ref_forward(params, query, reference_points, value, spatial_shapes,
                      num_heads, num_levels, num_points)
    # bf16 value slab + bf16 sampling matrix on the MXU (f32 accumulate) and the
    # approx-reciprocal softmax relax the tolerances accordingly.
    np.testing.assert_allclose(np.asarray(out), np.asarray(ref), rtol=2e-2, atol=2e-2)
    print("KERNEL_OK")
</pallas_src>

<mosaic_0001>
module attributes {stable_mosaic.version = 11 : i64} {
  func.func @_value_proj_kernel(%arg0: i32, %arg1: i32, %arg2: memref<1x80x32xf32, #tpu.memory_space<vmem>>, %arg3: memref<32x32xf32, #tpu.memory_space<vmem>>, %arg4: memref<1x32xf32, #tpu.memory_space<vmem>>, %arg5: memref<1x32x80xbf16, #tpu.memory_space<vmem>>) attributes {dimension_semantics = [#tpu.dimension_semantics<parallel>, #tpu.dimension_semantics<parallel>], iteration_bounds = array<i64: 2, 1>, scalar_prefetch = 0 : i64, scratch_operands = 0 : i64, tpu.core_type = #tpu.core_type<tc>, window_params = [{transform_indices = @transform_0, window_bounds = array<i64: 1, 80, 32>}, {pipeline_mode = #tpu.pipeline_mode<synchronous>, transform_indices = @transform_1, window_bounds = array<i64: 32, 32>}, {pipeline_mode = #tpu.pipeline_mode<synchronous>, transform_indices = @transform_2, window_bounds = array<i64: 1, 32>}, {transform_indices = @transform_3, window_bounds = array<i64: 1, 32, 80>}]} {
    %c0 = arith.constant 0 : index
    %c0_0 = arith.constant 0 : index
    %c0_1 = arith.constant 0 : index
    %0 = vector.load %arg2[%c0, %c0_0, %c0_1] : memref<1x80x32xf32, #tpu.memory_space<vmem>>, vector<1x80x32xf32>
    %1 = vector.shape_cast %0 : vector<1x80x32xf32> to vector<80x32xf32>
    %c0_2 = arith.constant 0 : index
    %c0_3 = arith.constant 0 : index
    %2 = vector.load %arg3[%c0_2, %c0_3] : memref<32x32xf32, #tpu.memory_space<vmem>>, vector<32x32xf32>
    %cst = arith.constant dense<0.000000e+00> : vector<80x32xf32>
    %3 = tpu.matmul %1, %2, %cst {dimension_numbers = #tpu.dot_dimension_numbers<[1], [0], [0], [1], [0, 0, 1, 1], [], []>} : vector<80x32xf32>, vector<32x32xf32>, vector<80x32xf32> -> vector<80x32xf32>
    %c0_4 = arith.constant 0 : index
    %c0_5 = arith.constant 0 : index
    %4 = vector.load %arg4[%c0_4, %c0_5] : memref<1x32xf32, #tpu.memory_space<vmem>>, vector<1x32xf32>
    %5 = vector.broadcast %4 : vector<1x32xf32> to vector<80x32xf32>
    %6 = arith.addf %3, %5 : vector<80x32xf32>
    %7 = tpu.transpose %6, [1, 0] : vector<80x32xf32> -> vector<32x80xf32>
    %8 = arith.truncf %7 : vector<32x80xf32> to vector<32x80xbf16>
    %c0_6 = arith.constant 0 : index
    %c0_7 = arith.constant 0 : index
    %c0_8 = arith.constant 0 : index
    %9 = vector.load %arg5[%c0_6, %c0_7, %c0_8] : memref<1x32x80xbf16, #tpu.memory_space<vmem>>, vector<1x32x80xbf16>
    %10 = vector.shape_cast %9 : vector<1x32x80xbf16> to vector<32x80xbf16>
    %11 = vector.shape_cast %8 : vector<32x80xbf16> to vector<1x32x80xbf16>
    tpu.vector_store %arg5[%c0_6, %c0_7, %c0_8], %11 {strides = array<i32>} : memref<1x32x80xbf16, #tpu.memory_space<vmem>>, vector<1x32x80xbf16>,
    return
  }
  func.func @transform_0(%arg0: i32, %arg1: i32) -> (i32, i32, i32) {
    %c0_i32 = arith.constant 0 : i32
    %c0_i32_0 = arith.constant 0 : i32
    return %arg0, %arg1, %c0_i32 : i32, i32, i32
  }
  func.func @transform_1(%arg0: i32, %arg1: i32) -> (i32, i32) {
    %c0_i32 = arith.constant 0 : i32
    %c0_i32_0 = arith.constant 0 : i32
    %c0_i32_1 = arith.constant 0 : i32
    return %c0_i32, %c0_i32_0 : i32, i32
  }
  func.func @transform_2(%arg0: i32, %arg1: i32) -> (i32, i32) {
    %c0_i32 = arith.constant 0 : i32
    %c0_i32_0 = arith.constant 0 : i32
    %c0_i32_1 = arith.constant 0 : i32
    return %c0_i32, %c0_i32_0 : i32, i32
  }
  func.func @transform_3(%arg0: i32, %arg1: i32) -> (i32, i32, i32) {
    %c0_i32 = arith.constant 0 : i32
    %c0_i32_0 = arith.constant 0 : i32
    return %arg0, %c0_i32, %arg1 : i32, i32, i32
  }
}

</mosaic_0001>

<llo_original>
// kernel: tpu_custom_call.1
$region0: #{tpu_custom_call.1}
  #allocation0 [shape = 'u32[]', space=smem, size = 0x4, offset = 0x4, fixed_abs, tag = 'smem constant byte address 0x4 - core index']
  #allocation1 [shape = 'u32[72,128]{1,0:T(1,128)}', space=vmem, size = 0x9000, scoped, tag = 'internal scratch']
  %s0 = inlined_call_operand.vmem [shape: f32[2,80,32], index: 0, kind: input, shape index: {}]
  %s1 = inlined_call_operand.vmem [shape: f32[32,32], index: 1, kind: input, shape index: {}]
  %s2 = inlined_call_operand.vmem [shape: f32[1,32], index: 2, kind: input, shape index: {}]
  %s3 = inlined_call_operand.hbm [shape: bf16[2,32,80], index: 3, kind: output, shape index: {}]
  %s4 = sld [smem:[#allocation0]]
  $region45: #{tpu_custom_call.1} parent=0
    _
  %s6 = ssub.s32 1, %s4
  %s7 = scalar_select 0, %s6, %s4
  $region1: #{tpu_custom_call.1} parent=0
    #allocation2 [shape = 'u8[16384]{0}', space=vmem, size = 0x4000, scoped, tag = 'output window, operand 0']
    #allocation3 [shape = 's32[2]{0}', space=sflag, size = 0x8, scoped, tag = 'scoped memory for tpu_custom_call.1']
    %8 = vsyncpa [#allocation3], 0
    %s9 = scalar_lea.sflag [#allocation3], 1
    %10 = vsyncpa %s9, 0
    loop: start=0, step=1, limit=4
    $region2: #{tpu_custom_call.1} parent=1 // loop_pre_header
      _
    $region3: #{tpu_custom_call.1} parent=1 // loop_header
      %s12 = sphi 0, %s16
      %p13 = scmp.ge.s32.totalorder %s12, 4
      %s19 = sphi 0, %s31
      %s20 = sphi 0, %s27
      %s21 = sphi 0, %s19
      %s22 = sphi 0, %s20
      %s23 = sphi 0, %s21
      %s24 = sphi 0, %s22
      %s36 = sphi 0, %s38
      %s39 = sphi 0, %s36
      %s40 = sphi 0, %s39
      %s56 = sphi 0, %s40
      %s60 = sphi 0, %s60
      %s62 = sphi 0, %s60
      %s63 = sphi 0, %s62
      %s77 = sphi 0, %s63
      %s81 = sphi 0, %s81
      %s83 = sphi 0, %s81
      %s84 = sphi 0, %s83
      %s98 = sphi 0, %s84
      %s106 = sphi 0, %s108
      %s109 = sphi 0, %s106
      %s110 = sphi 0, %s109
      %s126 = sphi 0, %s110
    $region4: #{tpu_custom_call.1} parent=1 // loop_header_branch
      %15 = sbr.rel (%p13) target = $region8
    $region5: #{tpu_custom_call.1} parent=1 // loop_body
      %s17 = ssub.s32 %s12, 1
      %s18 = ssub.s32 %s12, 2
      %s25 = sadd.s32 1, %s20
      %p26 = scmp.ge.s32.totalorder %s25, 1
      %s27 = scalar_select %p26, 0, %s25
      %s28 = sadd.s32 1, %s19
      %s29 = scalar_select %p26, %s28, %s19
      %p30 = scmp.ge.s32.totalorder %s29, 2
      %s31 = scalar_select %p30, 0, %s29
      %s32 = ssub.s32 %s19, %s31
      %s33 = ssub.s32 %s20, %s27
      %s34 = sor.u32 %s32, %s33
      %p35 = scmp.eq.s32.totalorder %s34, 0
      %s37 = sadd.s32 %s36, 1
      %s38 = scalar_select %p35, %s36, %s37
      %p41 = pneg %p35
      %p42 = scmp.eq.s32.totalorder %s12, 1
      %p43 = por %p41, %p42
      %p44 = scmp.ne.s32.totalorder %s36, %s39
      %p45 = scmp.eq.s32.totalorder %s12, 0
      %p46 = por %p44, %p45
      %p47 = scmp.ne.s32.totalorder %s36, %s39
      %p48 = scmp.eq.s32.totalorder %s17, 1
      %p49 = por %p47, %p48
      %p50 = scmp.ne.s32.totalorder %s39, %s40
      %p51 = scmp.eq.s32.totalorder %s17, 0
      %p52 = por %p50, %p51
      %p53 = scmp.ne.s32.totalorder %s39, %s40
      %p54 = scmp.eq.s32.totalorder %s18, 1
      %p55 = por %p53, %p54
      %p57 = scmp.ne.s32.totalorder %s40, %s56
      %p58 = scmp.eq.s32.totalorder %s18, 0
      %p59 = por %p57, %p58
      %s61 = sadd.s32 %s60, 1
      %p64 = scmp.eq.s32.totalorder %s12, 1
      %p65 = scmp.ne.s32.totalorder %s60, %s62
      %p66 = scmp.eq.s32.totalorder %s12, 0
      %p67 = por %p65, %p66
      %p68 = scmp.ne.s32.totalorder %s60, %s62
      %p69 = scmp.eq.s32.totalorder %s17, 1
      %p70 = por %p68, %p69
      %p71 = scmp.ne.s32.totalorder %s62, %s63
      %p72 = scmp.eq.s32.totalorder %s17, 0
      %p73 = por %p71, %p72
      %p74 = scmp.ne.s32.totalorder %s62, %s63
      %p75 = scmp.eq.s32.totalorder %s18, 1
      %p76 = por %p74, %p75
      %p78 = scmp.ne.s32.totalorder %s63, %s77
      %p79 = scmp.eq.s32.totalorder %s18, 0
      %p80 = por %p78, %p79
      %s82 = sadd.s32 %s81, 1
      %p85 = scmp.eq.s32.totalorder %s12, 1
      %p86 = scmp.ne.s32.totalorder %s81, %s83
      %p87 = scmp.eq.s32.totalorder %s12, 0
      %p88 = por %p86, %p87
      %p89 = scmp.ne.s32.totalorder %s81, %s83
      %p90 = scmp.eq.s32.totalorder %s17, 1
      %p91 = por %p89, %p90
      %p92 = scmp.ne.s32.totalorder %s83, %s84
      %p93 = scmp.eq.s32.totalorder %s17, 0
      %p94 = por %p92, %p93
      %p95 = scmp.ne.s32.totalorder %s83, %s84
      %p96 = scmp.eq.s32.totalorder %s18, 1
      %p97 = por %p95, %p96
      %p99 = scmp.ne.s32.totalorder %s84, %s98
      %p100 = scmp.eq.s32.totalorder %s18, 0
      %p101 = por %p99, %p100
      %s102 = ssub.s32 %s19, %s31
      %s103 = ssub.s32 %s20, %s27
      %s104 = sor.u32 %s102, %s103
      %p105 = scmp.eq.s32.totalorder %s104, 0
      %s107 = sadd.s32 %s106, 1
      %s108 = scalar_select %p105, %s106, %s107
      %p111 = pneg %p105
      %p112 = scmp.eq.s32.totalorder %s12, 1
      %p113 = por %p111, %p112
      %p114 = scmp.ne.s32.totalorder %s106, %s109
      %p115 = scmp.eq.s32.totalorder %s12, 0
      %p116 = por %p114, %p115
      %p117 = scmp.ne.s32.totalorder %s106, %s109
      %p118 = scmp.eq.s32.totalorder %s17, 1
      %p119 = por %p117, %p118
      %p120 = scmp.ne.s32.totalorder %s109, %s110
      %p121 = scmp.eq.s32.totalorder %s17, 0
      %p122 = por %p120, %p121
      %p123 = scmp.ne.s32.totalorder %s109, %s110
      %p124 = scmp.eq.s32.totalorder %s18, 1
      %p125 = por %p123, %p124
      %p127 = scmp.ne.s32.totalorder %s110, %s126
      %p128 = scmp.eq.s32.totalorder %s18, 0
      %p129 = por %p127, %p128
      %p130 = scmp.le.s32.totalorder 1, %s12
      %p131 = scmp.lt.s32.totalorder %s12, 3
      %p132 = pnand %p130, %p131
      %p133 = pneg %p132
      // Predicated region
      $region9: #{tpu_custom_call.1} parent=5 // pred_check
        _
      $region10: #{tpu_custom_call.1} parent=5 // pred_check_branch
        %135 = sbr.rel (%p132) target = $region12
      $region11: #{tpu_custom_call.1} parent=5 // pred_region
        %s136 = ssub.s32 %s12, 1
        // Predicated region
        $region13: #{tpu_custom_call.1} parent=11 // pred_check
          %p137 = pneg %p73
        $region14: #{tpu_custom_call.1} parent=11 // pred_check_branch
          %139 = sbr.rel (%p137) target = $region16
        $region15: #{tpu_custom_call.1} parent=11 // pred_region
          _
        $region16: #{tpu_custom_call.1} parent=11 // pred_fallthru
          _
        // Predicated region
        $region17: #{tpu_custom_call.1} parent=11 // pred_check
          %p140 = pneg %p94
        $region18: #{tpu_custom_call.1} parent=11 // pred_check_branch
          %142 = sbr.rel (%p140) target = $region20
        $region19: #{tpu_custom_call.1} parent=11 // pred_region
          _
        $region20: #{tpu_custom_call.1} parent=11 // pred_fallthru
          _
      $region12: #{tpu_custom_call.1} parent=5 // pred_fallthru
        _
      %p143 = scmp.lt.s32.totalorder %s12, 2
      // Predicated region
      $region21: #{tpu_custom_call.1} parent=5 // pred_check
        %p144 = pneg %p143
      $region22: #{tpu_custom_call.1} parent=5 // pred_check_branch
        %146 = sbr.rel (%p144) target = $region24
      $region23: #{tpu_custom_call.1} parent=5 // pred_region
        // Predicated region
        $region25: #{tpu_custom_call.1} parent=23 // pred_check
          %p147 = pneg %p46
        $region26: #{tpu_custom_call.1} parent=23 // pred_check_branch
          %149 = sbr.rel (%p147) target = $region28
        $region27: #{tpu_custom_call.1} parent=23 // pred_region
          %s150 = smul.u32 10, %s20
          %p151 = scmp.lt.s32.totalorder %s19, 1
          %s152 = scalar_select %p151, %s19, 1
          %p153 = scmp.lt.s32.totalorder %s150, 9
          %s154 = scalar_select %p153, %s150, 9
          %s155 = smul.addr %s152, 10
          %s156 = sadd.s32 %s154, %s155
          %s157 = smul.addr %s156, 8
          %s158 = scalar_lea.vmem %s0, %s157
          %s159 = smul.u32 10, %s20
        $region28: #{tpu_custom_call.1} parent=23 // pred_fallthru
          _
      $region24: #{tpu_custom_call.1} parent=5 // pred_fallthru
        _
      %p160 = scmp.le.s32.totalorder 1, %s12
      %p161 = scmp.lt.s32.totalorder %s12, 3
      %p162 = pnand %p160, %p161
      %p163 = pneg %p162
      // Predicated region
      $region29: #{tpu_custom_call.1} parent=5 // pred_check
        _
      $region30: #{tpu_custom_call.1} parent=5 // pred_check_branch
        %165 = sbr.rel (%p162) target = $region32
      $region31: #{tpu_custom_call.1} parent=5 // pred_region
        %s166 = ssub.s32 %s12, 1
        %s167 = smul.u32 10, %s22
        %p168 = scmp.lt.s32.totalorder %s21, 1
        %s169 = scalar_select %p168, %s21, 1
        %p170 = scmp.lt.s32.totalorder %s167, 9
        %s171 = scalar_select %p170, %s167, 9
        %s172 = smul.addr %s169, 10
        %s173 = sadd.s32 %s171, %s172
        %s174 = smul.addr %s173, 8
        %s175 = scalar_lea.vmem %s0, %s174
        %p176 = pneg %p52
        %p177 = pneg %p49
        %p178 = pneg %p73
        %p179 = pneg %p70
        %p180 = pneg %p94
        %p181 = pneg %p91
        %p182 = pneg %p122
        %p183 = pneg %p119
        %s184 = sand.u32 %s109, 1
        %s185 = scalar_lea.sflag [#allocation3], %s184
        %s186 = sand.u32 %s109, 1
        %s187 = smul.addr %s186, 16
        %s188 = scalar_lea.vmem [#allocation2], %s187
        %s189 = smul.u32 10, %s22
        %p190 = scmp.lt.s32.totalorder %s21, 1
        %s191 = scalar_select %p190, %s21, 1
        %p192 = scmp.lt.s32.totalorder %s189, 9
        %s193 = scalar_select %p192, %s189, 9
        %s194 = smul.addr %s191, 10
        %s195 = sadd.s32 %s193, %s194
        %s196 = smul.addr %s195, 8
        %s197 = scalar_lea.vmem %s0, %s196
        %s198 = smul.u32 10, %s22
        %v199 = vld [vmem:[%s197] sm:$0xff]
        %v200 = vld [vmem:[%s197 + $0x8] sm:$0xff]
        %v201 = vld [vmem:[%s197 + $0x10] sm:$0xff]
        %v202 = vld [vmem:[%s197 + $0x18] sm:$0xff]
        %v203 = vld [vmem:[%s197 + $0x20] sm:$0xff]
        %v204 = vld [vmem:[%s197 + $0x28] sm:$0xff]
        %v205 = vld [vmem:[%s197 + $0x30] sm:$0xff]
        %v206 = vld [vmem:[%s197 + $0x38] sm:$0xff]
        %v207 = vld [vmem:[%s197 + $0x40] sm:$0xff]
        %v208 = vld [vmem:[%s197 + $0x48] sm:$0xff]
        %v209 = vld [vmem:[%s1] sm:$0xff]
        %v210 = vld [vmem:[%s1 + $0x8] sm:$0xff]
        %v211 = vld [vmem:[%s1 + $0x10] sm:$0xff]
        %v212 = vld [vmem:[%s1 + $0x18] sm:$0xff]
        %v213 = vld [vmem:[%s2] sm:$0x1]
        %v215 = vperm.slane %v213, 0
        %vm217 = vcmask 261120
        %v219 = vsel %vm217, %v199, 0
        %v222 = vsel %vm217, %v200, 0
        %v225 = vsel %vm217, %v201, 0
        %v228 = vsel %vm217, %v202, 0
        %v231 = vsel %vm217, %v203, 0
        %v234 = vsel %vm217, %v204, 0
        %v237 = vsel %vm217, %v205, 0
        %v240 = vsel %vm217, %v206, 0
        %v243 = vsel %vm217, %v207, 0
        %v246 = vsel %vm217, %v208, 0
        %248 = vmatpush.msra.mxu0 0.0
        %249 = vmatpush.msra.mxu0 0.0
        %250 = vmatpush.msra.mxu0 0.0
        %251 = vmatpush.msra.mxu0 0.0
        %252 = vmatpush.msra.mxu0 0.0
        %253 = vmatpush.msra.mxu0 0.0
        %254 = vmatpush.msra.mxu0 0.0
        %255 = vmatpush.msra.mxu0 0.0
        %256 = vmatpush.msra.mxu0 0.0
        %257 = vmatpush.msra.mxu0 0.0
        %258 = vmatpush.msra.mxu0 0.0
        %259 = vmatpush.msra.mxu0 0.0
        %260 = vmatpush.msra.mxu0 %v212
        %261 = vmatpush.msra.mxu0 %v211
        %262 = vmatpush.msra.mxu0 %v210
        %263 = vmatpush.msra.mxu0 %v209
        %264 = vmatmul.f32.gmra.mxu0 %v219
        %v265 = vpop.f32.mrf.mxu0
        %v266 = vadd.f32 %v215, %v265
        %267 = vmatmul.f32.gmra.mxu0 %v222
        %v268 = vpop.f32.mrf.mxu0
        %v269 = vadd.f32 %v215, %v268
        %270 = vmatmul.f32.gmra.mxu0 %v225
        %v271 = vpop.f32.mrf.mxu0
        %v272 = vadd.f32 %v215, %v271
        %273 = vmatmul.f32.gmra.mxu0 %v228
        %v274 = vpop.f32.mrf.mxu0
        %v275 = vadd.f32 %v215, %v274
        %276 = vmatmul.f32.gmra.mxu0 %v231
        %v277 = vpop.f32.mrf.mxu0
        %v278 = vadd.f32 %v215, %v277
        %279 = vmatmul.f32.gmra.mxu0 %v234
        %v280 = vpop.f32.mrf.mxu0
        %v281 = vadd.f32 %v215, %v280
        %282 = vmatmul.f32.gmra.mxu0 %v237
        %v283 = vpop.f32.mrf.mxu0
        %v284 = vadd.f32 %v215, %v283
        %285 = vmatmul.f32.gmra.mxu0 %v240
        %v286 = vpop.f32.mrf.mxu0
        %v287 = vadd.f32 %v215, %v286
        %288 = vmatmul.f32.gmra.mxu0 %v243
        %v289 = vpop.f32.mrf.mxu0
        %v290 = vadd.f32 %v215, %v289
        %291 = vmatmul.f32.gmra.mxu0 %v246
        %v292 = vpop.f32.mrf.mxu0
        %v293 = vadd.f32 %v215, %v292
        %294 = vdwg.mxu0
        %295 = vxpose.xlu0.b32.start [1/16] %v266, 128
        %296 = vxpose.xlu0.b32.cont [2/16] %v269, 128
        %297 = vxpose.xlu0.b32.cont [3/16] %v272, 128
        %298 = vxpose.xlu0.b32.cont [4/16] %v275, 128
        %299 = vxpose.xlu0.b32.cont [5/16] %v278, 128
        %300 = vxpose.xlu0.b32.cont [6/16] %v281, 128
        %301 = vxpose.xlu0.b32.cont [7/16] %v284, 128
        %302 = vxpose.xlu0.b32.cont [8/16] %v287, 128
        %303 = vxpose.xlu0.b32.cont [9/16] %v290, 128
        %304 = vxpose.xlu0.b32.cont [10/16] %v293, 128
        %305 = vxpose.xlu0.b32.cont [11/16] 0.0, 128
        %306 = vxpose.xlu0.b32.cont [12/16] 0.0, 128
        %307 = vxpose.xlu0.b32.cont [13/16] 0.0, 128
        %308 = vxpose.xlu0.b32.cont [14/16] 0.0, 128
        %309 = vxpose.xlu0.b32.cont [15/16] 0.0, 128
        %310 = vxpose.xlu0.b32.end [16/16] 0.0, 128
        %v311 = vpop.trf.xlu0
        %v312 = vpop.trf.xlu0
        %v313 = vpop.trf.xlu0
        %v314 = vpop.trf.xlu0
        %v315 = vpop.trf.xlu0
        %v316 = vpop.trf.xlu0
        %v317 = vpop.trf.xlu0
        %v318 = vpop.trf.xlu0
        %v319 = vpop.trf.xlu0
        %v320 = vpop.trf.xlu0
        %v321 = vpop.trf.xlu0
        %v322 = vpop.trf.xlu0
        %v323 = vpop.trf.xlu0
        %v324 = vpop.trf.xlu0
        %v325 = vpop.trf.xlu0
        %v326 = vpop.trf.xlu0
        %v327 = vpack.c.bf16 %v311, %v311
        %v328 = vpack.c.bf16 %v312, %v312
        %v329 = vpack.c.bf16 %v313, %v313
        %v330 = vpack.c.bf16 %v314, %v314
        %vm331 = vcmask 650240
        %332 = vst.msk [vmem:[%s188] sm:$0xf] %vm331, %v327
        %333 = vst.msk [vmem:[%s188 + $0x4] sm:$0xf] %vm331, %v328
        %334 = vst.msk [vmem:[%s188 + $0x8] sm:$0xf] %vm331, %v329
        %335 = vst.msk [vmem:[%s188 + $0xc] sm:$0xf] %vm331, %v330
        %s336 = sand.u32 %s109, 1
        %s337 = scalar_lea.sflag [#allocation3], %s336
        %s338 = sand.u32 %s109, 1
        %s339 = smul.addr %s338, 16
        %s340 = scalar_lea.vmem [#allocation2], %s339
        // Predicated region
        $region33: #{tpu_custom_call.1} parent=31 // pred_check
          %p341 = pneg %p119
        $region34: #{tpu_custom_call.1} parent=31 // pred_check_branch
          %343 = sbr.rel (%p341) target = $region36
        $region35: #{tpu_custom_call.1} parent=31 // pred_region
          %345 = vsyncadd %s337, 0
          %s346 = smul.addr %s21, 4
          %s347 = sadd.s32 %s22, %s346
          %s348 = smul.addr %s347, 4
          %s349 = scalar_lea.hbm %s3, %s348
          %s350 = sshll.u32 %s340, 4
          %s351 = int_to_ptr.vmem [resolvable:$true] %s350
          %s352 = sshll.u32 %s349, 4
          %s353 = int_to_ptr.hbm [resolvable:$true] %s352
          %358 = dma.vmem_to_hbm [thread:$0]  %s351, 256, %s353, %s337, 64, 64, 4
        $region36: #{tpu_custom_call.1} parent=31 // pred_fallthru
          _
      $region32: #{tpu_custom_call.1} parent=5 // pred_fallthru
        _
      %p359 = scmp.le.s32.totalorder 2, %s12
      // Predicated region
      $region37: #{tpu_custom_call.1} parent=5 // pred_check
        %p360 = pneg %p359
      $region38: #{tpu_custom_call.1} parent=5 // pred_check_branch
        %362 = sbr.rel (%p360) target = $region40
      $region39: #{tpu_custom_call.1} parent=5 // pred_region
        %s363 = ssub.s32 %s12, 2
        // Predicated region
        $region41: #{tpu_custom_call.1} parent=39 // pred_check
          %p364 = pneg %p125
        $region42: #{tpu_custom_call.1} parent=39 // pred_check_branch
          %366 = sbr.rel (%p364) target = $region44
        $region43: #{tpu_custom_call.1} parent=39 // pred_region
          %s367 = sand.u32 %s110, 1
          %s368 = scalar_lea.sflag [#allocation3], %s367
          %s369 = sand.u32 %s110, 1
          %s370 = smul.addr %s369, 16
          %s371 = scalar_lea.vmem [#allocation2], %s370
          %373 = dma.done %s368, 256
        $region44: #{tpu_custom_call.1} parent=39 // pred_fallthru
          _
      $region40: #{tpu_custom_call.1} parent=5 // pred_fallthru
        _
    $region6: #{tpu_custom_call.1} parent=1 // loop_footer
      %s16 = sadd.s32 1, %s12
    $region7: #{tpu_custom_call.1} parent=1 // loop_footer_branch
      %11 = sbr.rel target = $region3
    $region8: #{tpu_custom_call.1} parent=1 // loop_exit
      _
    %374 = vsyncpa [#allocation3], 1
    %s375 = scalar_lea.sflag [#allocation3], 1
    %376 = vsyncpa %s375, 1

</llo_original>
